<compile_context>
chip_gen: v7x
topology: tpu7x:2x2x1
jax: 0.10.0
libtpu: 0.0.40
codegen_flags: <defaults>
</compile_context>

<pallas_src>
import functools

import jax
import jax.numpy as jnp
from jax.experimental import pallas as pl
from jax.experimental.pallas import tpu as pltpu

_LANE = 128               # complex elements per output row (output lanes)
_IN_LANE = 2 * _LANE      # interleaved float32 lanes per input row
_MAX_BLOCK_ROWS = 4096    # rows per grid step: 4 MiB input + 2 MiB output per block


def _modrelu_kernel(bias_ref, e_ref, x_ref, o_ref, *, epsilon):
    """x_ref: (BR, 256) interleaved [re, im] f32; e_ref: (256, 128) bf16 0/1 selector;
    o_ref: (BR, 128) f32."""
    b = bias_ref[0]
    e = e_ref[...]                              # pair-sum selector, exact 0/1 in bf16

    x = x_ref[...]
    sq = x * x                                  # f32, exact to f32 rounding
    # Split the squared terms into hi/lo bf16 parts (~16 mantissa bits combined) and
    # pair-sum adjacent (re, im) lanes on the MXU with two native bf16 passes:
    #   magsq[:, j] = re_j^2 + im_j^2      (relative error ~2^-17)
    sq_hi = sq.astype(jnp.bfloat16)
    sq_lo = (sq - sq_hi.astype(jnp.float32)).astype(jnp.bfloat16)
    magsq = (jnp.dot(sq_hi, e, preferred_element_type=jnp.float32)
             + jnp.dot(sq_lo, e, preferred_element_type=jnp.float32))   # (BR, 128)

    mag = jnp.sqrt(magsq)
    act = jnp.maximum(mag + b, 0.0)
    # Lane-dense full-width (128) store.
    o_ref[...] = act * (mag * pl.reciprocal(mag + epsilon, approx=False))


def _interleaved_float32(x):
    """complex64 -> flat float32 [re0, im0, re1, im1, ...] with no extra HBM pass when possible."""
    try:
        xf = jax.lax.bitcast_convert_type(x, jnp.float32)   # zero-copy byte view, shape (..., 2)
        if xf.shape != x.shape + (2,):
            raise ValueError("unexpected bitcast layout")
    except Exception:
        # TODO(synk): complex bitcast unsupported on this backend; pay one extra fused HBM pass.
        xf = jnp.stack([jnp.real(x), jnp.imag(x)], axis=-1)
    return xf.reshape(-1)


def modrelu_pallas(x, bias, epsilon=1e-8):
    """ModReLU forward. x: complex array (any shape). Returns float32 array of the same shape."""
    if not jnp.issubdtype(x.dtype, jnp.complexfloating):
        raise TypeError(f"Input must be a complex tensor. Got type {x.dtype}")
    x = x.astype(jnp.complex64)
    orig_shape = x.shape
    n = x.size
    if n == 0:
        return jnp.zeros(orig_shape, jnp.float32)

    flat = _interleaved_float32(x)              # (2n,) interleaved re/im

    # Rows of 128 complex elements (256 interleaved floats).  Only a sub-row tail
    # (n % 128 != 0) ever needs padding; row raggedness is handled by Pallas masking
    # of the last block, so the common case is pad-free and slice-free.
    rows = pl.cdiv(2 * n, _IN_LANE)             # == cdiv(n, 128)
    tail = rows * _IN_LANE - 2 * n
    if tail:
        # TODO(synk): uncommon non-128-aligned case still copies the flat array once.
        flat = jnp.pad(flat, (0, tail))
    x2d = flat.reshape(rows, _IN_LANE)

    # Largest block that fits comfortably double-buffered in VMEM while still giving
    # >= 2 grid steps for inputs with >= 16 rows (keeps both v7x TensorCores busy).
    # No block-equalisation: big inputs always use _MAX_BLOCK_ROWS-sized blocks and
    # the ragged last block is masked.
    if rows >= 16:
        block_rows = max(8, min(_MAX_BLOCK_ROWS, (rows // 2) // 8 * 8))
    else:
        block_rows = rows                        # single full-extent block
    num_blocks = pl.cdiv(rows, block_rows)

    # Exact 0/1 pair-sum selector: E[2j, j] = E[2j+1, j] = 1 (exact in bf16).
    e = (jnp.arange(_IN_LANE)[:, None] // 2
         == jnp.arange(_LANE)[None, :]).astype(jnp.bfloat16)            # (256, 128)
    bias_arr = jnp.asarray([bias], dtype=jnp.float32)

    # Explicit VMEM budget: double-buffered in/out/selector + headroom for the f32
    # square and its bf16 hi/lo splits and the matmul partials.
    in_bytes = block_rows * _IN_LANE * 4
    out_bytes = block_rows * _LANE * 4
    sel_bytes = _IN_LANE * _LANE * 2
    vmem_limit = min(2 * (in_bytes + out_bytes + sel_bytes)
                     + 8 * in_bytes + 4 * out_bytes + (4 << 20),
                     56 * 1024 * 1024)

    out = pl.pallas_call(
        functools.partial(_modrelu_kernel, epsilon=epsilon),
        out_shape=jax.ShapeDtypeStruct((rows, _LANE), jnp.float32),
        grid_spec=pl.GridSpec(
            grid=(num_blocks,),
            in_specs=[
                pl.BlockSpec(memory_space=pltpu.MemorySpace.SMEM),        # bias scalar
                pl.BlockSpec((_IN_LANE, _LANE), lambda i: (0, 0)),        # selector (constant block)
                pl.BlockSpec((block_rows, _IN_LANE), lambda i: (i, 0)),   # interleaved input
            ],
            out_specs=pl.BlockSpec((block_rows, _LANE), lambda i: (i, 0)),
        ),
        compiler_params=pltpu.CompilerParams(
            dimension_semantics=("parallel",),
            vmem_limit_bytes=vmem_limit,
        ),
    )(bias_arr, e, x2d)

    if rows * _LANE == n:
        return out.reshape(orig_shape)
    return out.reshape(-1)[:n].reshape(orig_shape)


class ModReLU:
    """Mirror of the PyTorch module: holds a scalar bias parameter (default 1.0)."""

    def __init__(self, bias: float = 1.0):
        self.bias = jnp.float32(bias)

    def __call__(self, x):
        return modrelu_pallas(x, self.bias)


def _reference(x, bias, epsilon=1e-8):
    mag = jnp.abs(x).astype(jnp.float32)
    return jnp.maximum(mag + bias, 0.0) * (mag / (mag + epsilon))


if __name__ == "__main__":
    key = jax.random.PRNGKey(0)
    k_re, k_im = jax.random.split(key)
    shape = (2, 4, 16, 16)  # NCHW, as produced by a complex conv activation
    x = (jax.random.normal(k_re, shape, dtype=jnp.float32)
         + 1j * jax.random.normal(k_im, shape, dtype=jnp.float32)).astype(jnp.complex64)

    mod = ModReLU(bias=1.0)
    y = jax.block_until_ready(mod(x))

    y_ref = _reference(x, mod.bias)
    assert y.shape == x.shape
    assert y.dtype == jnp.float32
    assert jnp.allclose(y, y_ref, atol=1e-5, rtol=1e-5), float(jnp.max(jnp.abs(y - y_ref)))

    print("KERNEL_OK")
</pallas_src>

<mosaic_0001>
module attributes {stable_mosaic.version = 11 : i64} {
  func.func @_modrelu_kernel(%arg0: i32, %arg1: memref<1xf32, #tpu.memory_space<smem>>, %arg2: memref<256x128xbf16, #tpu.memory_space<vmem>>, %arg3: memref<8x256xf32, #tpu.memory_space<vmem>>, %arg4: memref<8x128xf32, #tpu.memory_space<vmem>>) attributes {dimension_semantics = [#tpu.dimension_semantics<parallel>], iteration_bounds = array<i64: 2>, scalar_prefetch = 0 : i64, scratch_operands = 0 : i64, tpu.core_type = #tpu.core_type<tc>, window_params = [{transform_indices = @transform_0, window_bounds = array<i64: 1>}, {pipeline_mode = #tpu.pipeline_mode<synchronous>, transform_indices = @transform_1, window_bounds = array<i64: 256, 128>}, {transform_indices = @transform_2, window_bounds = array<i64: 8, 256>}, {transform_indices = @transform_3, window_bounds = array<i64: 8, 128>}]} {
    %c0 = arith.constant 0 : index
    %0 = memref.load %arg1[%c0] : memref<1xf32, #tpu.memory_space<smem>>
    %c0_0 = arith.constant 0 : index
    %c0_1 = arith.constant 0 : index
    %1 = vector.load %arg2[%c0_0, %c0_1] : memref<256x128xbf16, #tpu.memory_space<vmem>>, vector<256x128xbf16>
    %c0_2 = arith.constant 0 : index
    %c0_3 = arith.constant 0 : index
    %2 = vector.load %arg3[%c0_2, %c0_3] : memref<8x256xf32, #tpu.memory_space<vmem>>, vector<8x256xf32>
    %3 = arith.mulf %2, %2 : vector<8x256xf32>
    %4 = arith.truncf %3 : vector<8x256xf32> to vector<8x256xbf16>
    %5 = arith.extf %4 : vector<8x256xbf16> to vector<8x256xf32>
    %6 = arith.subf %3, %5 : vector<8x256xf32>
    %7 = arith.truncf %6 : vector<8x256xf32> to vector<8x256xbf16>
    %cst = arith.constant dense<0.000000e+00> : vector<8x128xf32>
    %8 = tpu.matmul %4, %1, %cst {dimension_numbers = #tpu.dot_dimension_numbers<[1], [0], [0], [1], [0, 0, 1, 1], [], []>} : vector<8x256xbf16>, vector<256x128xbf16>, vector<8x128xf32> -> vector<8x128xf32>
    %cst_4 = arith.constant dense<0.000000e+00> : vector<8x128xf32>
    %9 = tpu.matmul %7, %1, %cst_4 {dimension_numbers = #tpu.dot_dimension_numbers<[1], [0], [0], [1], [0, 0, 1, 1], [], []>} : vector<8x256xbf16>, vector<256x128xbf16>, vector<8x128xf32> -> vector<8x128xf32>
    %10 = arith.addf %8, %9 : vector<8x128xf32>
    %11 = math.sqrt %10 : vector<8x128xf32>
    %12 = vector.broadcast %0 : f32 to vector<8x128xf32>
    %13 = arith.addf %11, %12 : vector<8x128xf32>
    %cst_5 = arith.constant 0.000000e+00 : f32
    %14 = vector.broadcast %cst_5 : f32 to vector<8x128xf32>
    %15 = arith.maximumf %13, %14 : vector<8x128xf32>
    %cst_6 = arith.constant 9.99999993E-9 : f32
    %16 = vector.broadcast %cst_6 : f32 to vector<8x128xf32>
    %17 = arith.addf %11, %16 : vector<8x128xf32>
    %18 = tpu.reciprocal %17 : vector<8x128xf32> -> vector<8x128xf32>
    %19 = arith.mulf %11, %18 : vector<8x128xf32>
    %20 = arith.mulf %15, %19 : vector<8x128xf32>
    %c0_7 = arith.constant 0 : index
    %c0_8 = arith.constant 0 : index
    %21 = vector.load %arg4[%c0_7, %c0_8] : memref<8x128xf32, #tpu.memory_space<vmem>>, vector<8x128xf32>
    tpu.vector_store %arg4[%c0_7, %c0_8], %20 {strides = array<i32>} : memref<8x128xf32, #tpu.memory_space<vmem>>, vector<8x128xf32>,
    return
  }
  func.func @transform_0(%arg0: i32) -> i32 {
    %c0_i32 = arith.constant 0 : i32
    %c0_i32_0 = arith.constant 0 : i32
    return %c0_i32 : i32
  }
  func.func @transform_1(%arg0: i32) -> (i32, i32) {
    %c0_i32 = arith.constant 0 : i32
    %c0_i32_0 = arith.constant 0 : i32
    %c0_i32_1 = arith.constant 0 : i32
    return %c0_i32, %c0_i32_0 : i32, i32
  }
  func.func @transform_2(%arg0: i32) -> (i32, i32) {
    %c0_i32 = arith.constant 0 : i32
    %c0_i32_0 = arith.constant 0 : i32
    return %arg0, %c0_i32 : i32, i32
  }
  func.func @transform_3(%arg0: i32) -> (i32, i32) {
    %c0_i32 = arith.constant 0 : i32
    %c0_i32_0 = arith.constant 0 : i32
    return %arg0, %c0_i32 : i32, i32
  }
}

</mosaic_0001>

<llo_original>
// kernel: tpu_custom_call.1
$region0: #{tpu_custom_call.1}
  #allocation0 [shape = 'u32[]', space=smem, size = 0x4, offset = 0x4, fixed_abs, tag = 'smem constant byte address 0x4 - core index']
  #allocation1 [shape = 'u32[144,128]{1,0:T(1,128)}', space=vmem, size = 0x12000, scoped, tag = 'internal scratch']
  #allocation2 [shape = 'f32[1]{0:T(128)S(6)}', space=smem, size = 0x200, scoped, tag = 'scoped memory for tpu_custom_call.1']
  %s0 = inlined_call_operand.<no memory space> [shape: f32[1], index: 0, kind: input, shape index: {}]
  %s1 = inlined_call_operand.hbm [shape: bf16[256,128], index: 1, kind: input, shape index: {}]
  %s2 = inlined_call_operand.hbm [shape: f32[16,256], index: 2, kind: input, shape index: {}]
  %s3 = inlined_call_operand.hbm [shape: f32[16,128], index: 3, kind: output, shape index: {}]
  %s4 = sld [smem:[#allocation0]]
  $region53: #{tpu_custom_call.1} parent=0
    _
  %s6 = ssub.s32 1, %s4
  %s7 = scalar_select 0, %s6, %s4
  %8 = sst [smem:[#allocation2]] %s0
  $region1: #{tpu_custom_call.1} parent=0
    #allocation3 [shape = 'u8[65536]{0}', space=vmem, size = 0x10000, scoped, tag = 'input window, operand 1, single buffered']
    #allocation4 [shape = 's32[2]{0}', space=sflag, size = 0x8, scoped, tag = 'scoped memory for tpu_custom_call.1']
    #allocation5 [shape = 's32[2]{0}', space=sflag, size = 0x8, scoped, tag = 'scoped memory for tpu_custom_call.1']
    #allocation6 [shape = 'u8[16384]{0}', space=vmem, size = 0x4000, scoped, tag = 'input window, operand 2']
    #allocation7 [shape = 's32[2]{0}', space=sflag, size = 0x8, scoped, tag = 'scoped memory for tpu_custom_call.1']
    #allocation8 [shape = 'u8[8192]{0}', space=vmem, size = 0x2000, scoped, tag = 'output window, operand 0']
    %9 = vsyncpa [#allocation4], 0
    %10 = vsyncpa [#allocation7], 0
    %s11 = scalar_lea.sflag [#allocation7], 1
    %12 = vsyncpa %s11, 0
    %13 = vsyncpa [#allocation5], 0
    %s14 = scalar_lea.sflag [#allocation5], 1
    %15 = vsyncpa %s14, 0
    loop: start=0, step=1, limit=4
    $region2: #{tpu_custom_call.1} parent=1 // loop_pre_header
      _
    $region3: #{tpu_custom_call.1} parent=1 // loop_header
      %s17 = sphi 0, %s21
      %p18 = scmp.ge.s32.totalorder %s17, 4
      %s25 = sphi 0, %s25
      %s27 = sphi 0, %s25
      %s28 = sphi 0, %s27
      %s42 = sphi 0, %s28
      %s46 = sphi 0, %s46
      %s48 = sphi 0, %s46
      %s49 = sphi 0, %s48
      %s63 = sphi 0, %s49
      %s69 = sphi 0, %s71
      %s72 = sphi 0, %s69
      %s73 = sphi 0, %s72
      %s89 = sphi 0, %s73
      %s95 = sphi 0, %s97
      %s98 = sphi 0, %s95
      %s99 = sphi 0, %s98
      %s115 = sphi 0, %s99
    $region4: #{tpu_custom_call.1} parent=1 // loop_header_branch
      %20 = sbr.rel (%p18) target = $region8
    $region5: #{tpu_custom_call.1} parent=1 // loop_body
      %s22 = ssub.s32 %s17, 1
      %s23 = ssub.s32 %s17, 2
      %s24 = sadd.s32 %s17, 1
      %s26 = sadd.s32 %s25, 1
      %p29 = scmp.eq.s32.totalorder %s17, 1
      %p30 = scmp.ne.s32.totalorder %s25, %s27
      %p31 = scmp.eq.s32.totalorder %s17, 0
      %p32 = por %p30, %p31
      %p33 = scmp.ne.s32.totalorder %s25, %s27
      %p34 = scmp.eq.s32.totalorder %s22, 1
      %p35 = por %p33, %p34
      %p36 = scmp.ne.s32.totalorder %s27, %s28
      %p37 = scmp.eq.s32.totalorder %s22, 0
      %p38 = por %p36, %p37
      %p39 = scmp.ne.s32.totalorder %s27, %s28
      %p40 = scmp.eq.s32.totalorder %s23, 1
      %p41 = por %p39, %p40
      %p43 = scmp.ne.s32.totalorder %s28, %s42
      %p44 = scmp.eq.s32.totalorder %s23, 0
      %p45 = por %p43, %p44
      %s47 = sadd.s32 %s46, 1
      %p50 = scmp.eq.s32.totalorder %s17, 1
      %p51 = scmp.ne.s32.totalorder %s46, %s48
      %p52 = scmp.eq.s32.totalorder %s17, 0
      %p53 = por %p51, %p52
      %p54 = scmp.ne.s32.totalorder %s46, %s48
      %p55 = scmp.eq.s32.totalorder %s22, 1
      %p56 = por %p54, %p55
      %p57 = scmp.ne.s32.totalorder %s48, %s49
      %p58 = scmp.eq.s32.totalorder %s22, 0
      %p59 = por %p57, %p58
      %p60 = scmp.ne.s32.totalorder %s48, %s49
      %p61 = scmp.eq.s32.totalorder %s23, 1
      %p62 = por %p60, %p61
      %p64 = scmp.ne.s32.totalorder %s49, %s63
      %p65 = scmp.eq.s32.totalorder %s23, 0
      %p66 = por %p64, %p65
      %s67 = ssub.s32 %s17, %s24
      %p68 = scmp.eq.s32.totalorder %s67, 0
      %s70 = sadd.s32 %s69, 1
      %s71 = scalar_select %p68, %s69, %s70
      %p74 = pneg %p68
      %p75 = scmp.eq.s32.totalorder %s17, 1
      %p76 = por %p74, %p75
      %p77 = scmp.ne.s32.totalorder %s69, %s72
      %p78 = scmp.eq.s32.totalorder %s17, 0
      %p79 = por %p77, %p78
      %p80 = scmp.ne.s32.totalorder %s69, %s72
      %p81 = scmp.eq.s32.totalorder %s22, 1
      %p82 = por %p80, %p81
      %p83 = scmp.ne.s32.totalorder %s72, %s73
      %p84 = scmp.eq.s32.totalorder %s22, 0
      %p85 = por %p83, %p84
      %p86 = scmp.ne.s32.totalorder %s72, %s73
      %p87 = scmp.eq.s32.totalorder %s23, 1
      %p88 = por %p86, %p87
      %p90 = scmp.ne.s32.totalorder %s73, %s89
      %p91 = scmp.eq.s32.totalorder %s23, 0
      %p92 = por %p90, %p91
      %s93 = ssub.s32 %s17, %s24
      %p94 = scmp.eq.s32.totalorder %s93, 0
      %s96 = sadd.s32 %s95, 1
      %s97 = scalar_select %p94, %s95, %s96
      %p100 = pneg %p94
      %p101 = scmp.eq.s32.totalorder %s17, 1
      %p102 = por %p100, %p101
      %p103 = scmp.ne.s32.totalorder %s95, %s98
      %p104 = scmp.eq.s32.totalorder %s17, 0
      %p105 = por %p103, %p104
      %p106 = scmp.ne.s32.totalorder %s95, %s98
      %p107 = scmp.eq.s32.totalorder %s22, 1
      %p108 = por %p106, %p107
      %p109 = scmp.ne.s32.totalorder %s98, %s99
      %p110 = scmp.eq.s32.totalorder %s22, 0
      %p111 = por %p109, %p110
      %p112 = scmp.ne.s32.totalorder %s98, %s99
      %p113 = scmp.eq.s32.totalorder %s23, 1
      %p114 = por %p112, %p113
      %p116 = scmp.ne.s32.totalorder %s99, %s115
      %p117 = scmp.eq.s32.totalorder %s23, 0
      %p118 = por %p116, %p117
      %p119 = scmp.le.s32.totalorder 1, %s17
      %p120 = scmp.lt.s32.totalorder %s17, 3
      %p121 = pnand %p119, %p120
      %p122 = pneg %p121
      // Predicated region
      $region9: #{tpu_custom_call.1} parent=5 // pred_check
        _
      $region10: #{tpu_custom_call.1} parent=5 // pred_check_branch
        %124 = sbr.rel (%p121) target = $region12
      $region11: #{tpu_custom_call.1} parent=5 // pred_region
        %s125 = ssub.s32 %s17, 1
        // Predicated region
        $region13: #{tpu_custom_call.1} parent=11 // pred_check
          %p126 = pneg %p38
        $region14: #{tpu_custom_call.1} parent=11 // pred_check_branch
          %128 = sbr.rel (%p126) target = $region16
        $region15: #{tpu_custom_call.1} parent=11 // pred_region
          _
        $region16: #{tpu_custom_call.1} parent=11 // pred_fallthru
          _
        // Predicated region
        $region17: #{tpu_custom_call.1} parent=11 // pred_check
          %p129 = pneg %p59
        $region18: #{tpu_custom_call.1} parent=11 // pred_check_branch
          %131 = sbr.rel (%p129) target = $region20
        $region19: #{tpu_custom_call.1} parent=11 // pred_region
          %s133 = ssub.s32 2048, 2048
          %134 = vsyncadd [#allocation4], %s133
          %s135 = sshll.u32 [#allocation3], 4
          %s136 = int_to_ptr.vmem [resolvable:$true] %s135
          %141 = dma.hbm_to_vmem [thread:$0]  %s1, 2048, %s136, [#allocation4], 64, 64, 4
        $region20: #{tpu_custom_call.1} parent=11 // pred_fallthru
          _
      $region12: #{tpu_custom_call.1} parent=5 // pred_fallthru
        _
      %p142 = scmp.lt.s32.totalorder %s17, 2
      // Predicated region
      $region21: #{tpu_custom_call.1} parent=5 // pred_check
        %p143 = pneg %p142
      $region22: #{tpu_custom_call.1} parent=5 // pred_check_branch
        %145 = sbr.rel (%p143) target = $region24
      $region23: #{tpu_custom_call.1} parent=5 // pred_region
        // Predicated region
        $region25: #{tpu_custom_call.1} parent=23 // pred_check
          %p146 = pneg %p79
        $region26: #{tpu_custom_call.1} parent=23 // pred_check_branch
          %148 = sbr.rel (%p146) target = $region28
        $region27: #{tpu_custom_call.1} parent=23 // pred_region
          %s149 = sand.u32 %s69, 1
          %s150 = scalar_lea.sflag [#allocation7], %s149
          %s151 = sand.u32 %s69, 1
          %s152 = smul.addr %s151, 16
          %s153 = scalar_lea.vmem [#allocation6], %s152
          %s155 = ssub.s32 256, 256
          %156 = vsyncadd %s150, %s155
          %s157 = smul.addr %s17, 2
          %s158 = smul.addr %s157, 128
          %s159 = scalar_lea.hbm %s2, %s158
          %s161 = sshll.u32 %s153, 4
          %s162 = int_to_ptr.vmem [resolvable:$true] %s161
          %164 = dma.hbm_to_vmem [thread:$0]  %s159, 256, %s162, %s150
        $region28: #{tpu_custom_call.1} parent=23 // pred_fallthru
          _
      $region24: #{tpu_custom_call.1} parent=5 // pred_fallthru
        _
      %p165 = scmp.le.s32.totalorder 1, %s17
      %p166 = scmp.lt.s32.totalorder %s17, 3
      %p167 = pnand %p165, %p166
      %p168 = pneg %p167
      // Predicated region
      $region29: #{tpu_custom_call.1} parent=5 // pred_check
        _
      $region30: #{tpu_custom_call.1} parent=5 // pred_check_branch
        %170 = sbr.rel (%p167) target = $region32
      $region31: #{tpu_custom_call.1} parent=5 // pred_region
        %s171 = ssub.s32 %s17, 1
        // Predicated region
        $region33: #{tpu_custom_call.1} parent=31 // pred_check
          %p172 = pneg %p59
        $region34: #{tpu_custom_call.1} parent=31 // pred_check_branch
          %174 = sbr.rel (%p172) target = $region36
        $region35: #{tpu_custom_call.1} parent=31 // pred_region
          %175 = dma.done [#allocation4], 2048
        $region36: #{tpu_custom_call.1} parent=31 // pred_fallthru
          _
        %s176 = sand.u32 %s72, 1
        %s177 = scalar_lea.sflag [#allocation7], %s176
        %s178 = sand.u32 %s72, 1
        %s179 = smul.addr %s178, 16
        %s180 = scalar_lea.vmem [#allocation6], %s179
        // Predicated region
        $region37: #{tpu_custom_call.1} parent=31 // pred_check
          %p181 = pneg %p85
        $region38: #{tpu_custom_call.1} parent=31 // pred_check_branch
          %183 = sbr.rel (%p181) target = $region40
        $region39: #{tpu_custom_call.1} parent=31 // pred_region
          %184 = dma.done %s177, 256
        $region40: #{tpu_custom_call.1} parent=31 // pred_fallthru
          _
        %p185 = pneg %p38
        %p186 = pneg %p35
        %p187 = pneg %p59
        %p188 = pneg %p56
        %s189 = sand.u32 %s72, 1
        %s190 = scalar_lea.sflag [#allocation7], %s189
        %s191 = sand.u32 %s72, 1
        %s192 = smul.addr %s191, 16
        %s193 = scalar_lea.vmem [#allocation6], %s192
        %p194 = pneg %p85
        %p195 = pneg %p82
        %p196 = pneg %p111
        %p197 = pneg %p108
        %s198 = sand.u32 %s98, 1
        %s199 = scalar_lea.sflag [#allocation5], %s198
        %s200 = sand.u32 %s98, 1
        %s201 = smul.addr %s200, 8
        %s202 = scalar_lea.vmem [#allocation8], %s201
        %s204 = sld [smem:[#allocation2]]
        %v205 = vld [vmem:[#allocation3] sm:$0xf]
        %v206 = vld [vmem:[#allocation3 + $0x4] sm:$0xf]
        %v207 = vld [vmem:[#allocation3 + $0x8] sm:$0xf]
        %v208 = vld [vmem:[#allocation3 + $0xc] sm:$0xf]
        %v209 = vld [vmem:[#allocation3 + $0x10] sm:$0xf]
        %v210 = vld [vmem:[#allocation3 + $0x14] sm:$0xf]
        %v211 = vld [vmem:[#allocation3 + $0x18] sm:$0xf]
        %v212 = vld [vmem:[#allocation3 + $0x1c] sm:$0xf]
        %v213 = vld [vmem:[#allocation3 + $0x20] sm:$0xf]
        %v214 = vld [vmem:[#allocation3 + $0x24] sm:$0xf]
        %v215 = vld [vmem:[#allocation3 + $0x28] sm:$0xf]
        %v216 = vld [vmem:[#allocation3 + $0x2c] sm:$0xf]
        %v217 = vld [vmem:[#allocation3 + $0x30] sm:$0xf]
        %v218 = vld [vmem:[#allocation3 + $0x34] sm:$0xf]
        %v219 = vld [vmem:[#allocation3 + $0x38] sm:$0xf]
        %v220 = vld [vmem:[#allocation3 + $0x3c] sm:$0xf]
        %v221 = vld [vmem:[#allocation3 + $0x40] sm:$0xf]
        %v222 = vld [vmem:[#allocation3 + $0x44] sm:$0xf]
        %v223 = vld [vmem:[#allocation3 + $0x48] sm:$0xf]
        %v224 = vld [vmem:[#allocation3 + $0x4c] sm:$0xf]
        %v225 = vld [vmem:[#allocation3 + $0x50] sm:$0xf]
        %v226 = vld [vmem:[#allocation3 + $0x54] sm:$0xf]
        %v227 = vld [vmem:[#allocation3 + $0x58] sm:$0xf]
        %v228 = vld [vmem:[#allocation3 + $0x5c] sm:$0xf]
        %v229 = vld [vmem:[#allocation3 + $0x60] sm:$0xf]
        %v230 = vld [vmem:[#allocation3 + $0x64] sm:$0xf]
        %v231 = vld [vmem:[#allocation3 + $0x68] sm:$0xf]
        %v232 = vld [vmem:[#allocation3 + $0x6c] sm:$0xf]
        %v233 = vld [vmem:[#allocation3 + $0x70] sm:$0xf]
        %v234 = vld [vmem:[#allocation3 + $0x74] sm:$0xf]
        %v235 = vld [vmem:[#allocation3 + $0x78] sm:$0xf]
        %v236 = vld [vmem:[#allocation3 + $0x7c] sm:$0xf]
        %v237 = vld [vmem:[%s180] sm:$0xff]
        %v238 = vld [vmem:[%s180 + $0x8] sm:$0xff]
        %v239 = vmul.f32 %v237, %v237
        %v240 = vmul.f32 %v238, %v238
        %v241 = vpack.c.bf16 %v239, %v239
        %v242 = vpack.c.bf16 %v240, %v240
        %v243 = vunpack.c.l.bf16 %v241
        %v244 = vunpack.c.l.bf16 %v242
        %v245 = vsub.f32 %v239, %v243
        %v246 = vsub.f32 %v240, %v244
        %v247 = vpack.c.bf16 %v245, %v245
        %v248 = vpack.c.bf16 %v246, %v246
        %v281 = vunpack.c.l.b16 %v205
        %v282 = vunpack.c.l.b16 %v206
        %v283 = vunpack.c.l.b16 %v207
        %v284 = vunpack.c.l.b16 %v208
        %v285 = vunpack.c.l.b16 %v209
        %v286 = vunpack.c.l.b16 %v210
        %v287 = vunpack.c.l.b16 %v211
        %v288 = vunpack.c.l.b16 %v212
        %v289 = vunpack.c.l.b16 %v213
        %v290 = vunpack.c.l.b16 %v214
        %v291 = vunpack.c.l.b16 %v215
        %v292 = vunpack.c.l.b16 %v216
        %v293 = vunpack.c.l.b16 %v217
        %v294 = vunpack.c.l.b16 %v218
        %v295 = vunpack.c.l.b16 %v219
        %v296 = vunpack.c.l.b16 %v220
        %v297 = vunpack.c.l.b16 %v221
        %v298 = vunpack.c.l.b16 %v222
        %v299 = vunpack.c.l.b16 %v223
        %v300 = vunpack.c.l.b16 %v224
        %v301 = vunpack.c.l.b16 %v225
        %v302 = vunpack.c.l.b16 %v226
        %v303 = vunpack.c.l.b16 %v227
        %v304 = vunpack.c.l.b16 %v228
        %v305 = vunpack.c.l.b16 %v229
        %v306 = vunpack.c.l.b16 %v230
        %v307 = vunpack.c.l.b16 %v231
        %v308 = vunpack.c.l.b16 %v232
        %v309 = vunpack.c.l.b16 %v233
        %v310 = vunpack.c.l.b16 %v234
        %v311 = vunpack.c.l.b16 %v235
        %v312 = vunpack.c.l.b16 %v236
        %v313 = vpack.c.b16 %v282, %v281
        %v314 = vpack.c.b16 %v284, %v283
        %v315 = vpack.c.b16 %v286, %v285
        %v316 = vpack.c.b16 %v288, %v287
        %v317 = vpack.c.b16 %v290, %v289
        %v318 = vpack.c.b16 %v292, %v291
        %v319 = vpack.c.b16 %v294, %v293
        %v320 = vpack.c.b16 %v296, %v295
        %v321 = vpack.c.b16 %v298, %v297
        %v322 = vpack.c.b16 %v300, %v299
        %v323 = vpack.c.b16 %v302, %v301
        %v324 = vpack.c.b16 %v304, %v303
        %v325 = vpack.c.b16 %v306, %v305
        %v326 = vpack.c.b16 %v308, %v307
        %v327 = vpack.c.b16 %v310, %v309
        %v328 = vpack.c.b16 %v312, %v311
        %345 = vmatprep.subr.bf16.mxu0 0
        %346 = vmatpush1.bf16.msra.mxu0 %v313
        %347 = vmatprep.subr.bf16.mxu0 0
        %348 = vmatpush1.bf16.msra.mxu0 %v314
        %349 = vmatprep.subr.bf16.mxu0 0
        %350 = vmatpush1.bf16.msra.mxu0 %v315
        %351 = vmatprep.subr.bf16.mxu0 0
        %352 = vmatpush1.bf16.msra.mxu0 %v316
        %353 = vmatprep.subr.bf16.mxu0 0
        %354 = vmatpush1.bf16.msra.mxu0 %v317
        %355 = vmatprep.subr.bf16.mxu0 0
        %356 = vmatpush1.bf16.msra.mxu0 %v318
        %357 = vmatprep.subr.bf16.mxu0 0
        %358 = vmatpush1.bf16.msra.mxu0 %v319
        %359 = vmatprep.subr.bf16.mxu0 0
        %360 = vmatpush1.bf16.msra.mxu0 %v320
        %361 = vmatprep.subr.bf16.mxu0 0
        %362 = vmatpush1.bf16.msra.mxu0 %v321
        %363 = vmatprep.subr.bf16.mxu0 0
        %364 = vmatpush1.bf16.msra.mxu0 %v322
        %365 = vmatprep.subr.bf16.mxu0 0
        %366 = vmatpush1.bf16.msra.mxu0 %v323
        %367 = vmatprep.subr.bf16.mxu0 0
        %368 = vmatpush1.bf16.msra.mxu0 %v324
        %369 = vmatprep.subr.bf16.mxu0 0
        %370 = vmatpush1.bf16.msra.mxu0 %v325
        %371 = vmatprep.subr.bf16.mxu0 0
        %372 = vmatpush1.bf16.msra.mxu0 %v326
        %373 = vmatprep.subr.bf16.mxu0 0
        %374 = vmatpush1.bf16.msra.mxu0 %v327
        %375 = vmatprep.subr.bf16.mxu0 0
        %376 = vmatpush1.bf16.msra.mxu0 %v328
        %377 = vmatprep.mubr.bf16.mxu0 %v248
        %378 = vmatmul.mubr.bf16.gmra.mrb[0].mxu0 %v247
        %v379 = vpop.f32.mrb[0].mxu0
        %v380 = vadd.f32 0.0, %v379
        %v381 = vpop.f32.mrb[0].mxu0
        %v382 = vpop.f32.mrb[0].mxu0
        %v383 = vpop.f32.mrb[0].mxu0
        %384 = vdwg.mxu0
        %385 = vmatprep.subr.bf16.mxu0 0
        %386 = vmatpush1.bf16.msra.mxu0 %v313
        %387 = vmatprep.subr.bf16.mxu0 0
        %388 = vmatpush1.bf16.msra.mxu0 %v314
        %389 = vmatprep.subr.bf16.mxu0 0
        %390 = vmatpush1.bf16.msra.mxu0 %v315
        %391 = vmatprep.subr.bf16.mxu0 0
        %392 = vmatpush1.bf16.msra.mxu0 %v316
        %393 = vmatprep.subr.bf16.mxu0 0
        %394 = vmatpush1.bf16.msra.mxu0 %v317
        %395 = vmatprep.subr.bf16.mxu0 0
        %396 = vmatpush1.bf16.msra.mxu0 %v318
        %397 = vmatprep.subr.bf16.mxu0 0
        %398 = vmatpush1.bf16.msra.mxu0 %v319
        %399 = vmatprep.subr.bf16.mxu0 0
        %400 = vmatpush1.bf16.msra.mxu0 %v320
        %401 = vmatprep.subr.bf16.mxu0 0
        %402 = vmatpush1.bf16.msra.mxu0 %v321
        %403 = vmatprep.subr.bf16.mxu0 0
        %404 = vmatpush1.bf16.msra.mxu0 %v322
        %405 = vmatprep.subr.bf16.mxu0 0
        %406 = vmatpush1.bf16.msra.mxu0 %v323
        %407 = vmatprep.subr.bf16.mxu0 0
        %408 = vmatpush1.bf16.msra.mxu0 %v324
        %409 = vmatprep.subr.bf16.mxu0 0
        %410 = vmatpush1.bf16.msra.mxu0 %v325
        %411 = vmatprep.subr.bf16.mxu0 0
        %412 = vmatpush1.bf16.msra.mxu0 %v326
        %413 = vmatprep.subr.bf16.mxu0 0
        %414 = vmatpush1.bf16.msra.mxu0 %v327
        %415 = vmatprep.subr.bf16.mxu0 0
        %416 = vmatpush1.bf16.msra.mxu0 %v328
        %417 = vmatprep.mubr.bf16.mxu0 %v242
        %418 = vmatmul.mubr.bf16.gmra.mrb[0].mxu0 %v241
        %v419 = vpop.f32.mrb[0].mxu0
        %v420 = vadd.f32 %v380, %v419
        %v421 = vpop.f32.mrb[0].mxu0
        %v422 = vpop.f32.mrb[0].mxu0
        %v423 = vpop.f32.mrb[0].mxu0
        %424 = vdwg.mxu0
        %v425 = vrsqrt.pop %v420
        %v426 = vmul.f32 %v420, %v425
        %vm427 = vcmp.eq.f32.partialorder %v420, inf
        %v428 = vsel %vm427, %v420, %v426
        %vm429 = vcmp.eq.f32.partialorder %v420, 0.0
        %v430 = vand.u32 %v420, 2147483648
        %v431 = vsel %vm429, %v430, %v428
        %v432 = vstv %s204
        %v433 = vadd.f32 %v431, %v432
        %v434 = vmax.f32 %v433, 0.0
        %v435 = vadd.f32 %v431, 1e-08
        %v436 = vrcp.pop %v435
        %v437 = vmul.f32 %v431, %v436
        %v438 = vmul.f32 %v434, %v437
        %439 = vst [vmem:[%s202] sm:$0xff] %v438
        %s440 = sand.u32 %s98, 1
        %s441 = scalar_lea.sflag [#allocation5], %s440
        %s442 = sand.u32 %s98, 1
        %s443 = smul.addr %s442, 8
        %s444 = scalar_lea.vmem [#allocation8], %s443
        // Predicated region
        $region41: #{tpu_custom_call.1} parent=31 // pred_check
          %p445 = pneg %p108
        $region42: #{tpu_custom_call.1} parent=31 // pred_check_branch
          %447 = sbr.rel (%p445) target = $region44
        $region43: #{tpu_custom_call.1} parent=31 // pred_region
          %s449 = ssub.s32 128, 128
          %450 = vsyncadd %s441, %s449
          %s451 = smul.addr %s22, 128
          %s452 = scalar_lea.hbm %s3, %s451
          %s454 = sshll.u32 %s444, 4
          %s455 = int_to_ptr.vmem [resolvable:$true] %s454
          %457 = dma.vmem_to_hbm [thread:$0]  %s455, 128, %s452, %s441
        $region44: #{tpu_custom_call.1} parent=31 // pred_fallthru
          _
      $region32: #{tpu_custom_call.1} parent=5 // pred_fallthru
        _
      %p458 = scmp.le.s32.totalorder 2, %s17
      // Predicated region
      $region45: #{tpu_custom_call.1} parent=5 // pred_check
        %p459 = pneg %p458
      $region46: #{tpu_custom_call.1} parent=5 // pred_check_branch
        %461 = sbr.rel (%p459) target = $region48
      $region47: #{tpu_custom_call.1} parent=5 // pred_region
        %s462 = ssub.s32 %s17, 2
        // Predicated region
        $region49: #{tpu_custom_call.1} parent=47 // pred_check
          %p463 = pneg %p114
        $region50: #{tpu_custom_call.1} parent=47 // pred_check_branch
          %465 = sbr.rel (%p463) target = $region52
        $region51: #{tpu_custom_call.1} parent=47 // pred_region
          %s466 = sand.u32 %s99, 1
          %s467 = scalar_lea.sflag [#allocation5], %s466
          %s468 = sand.u32 %s99, 1
          %s469 = smul.addr %s468, 8
          %s470 = scalar_lea.vmem [#allocation8], %s469
          %471 = dma.done %s467, 128
        $region52: #{tpu_custom_call.1} parent=47 // pred_fallthru
          _
      $region48: #{tpu_custom_call.1} parent=5 // pred_fallthru
        _
    $region6: #{tpu_custom_call.1} parent=1 // loop_footer
      %s21 = sadd.s32 1, %s17
    $region7: #{tpu_custom_call.1} parent=1 // loop_footer_branch
      %16 = sbr.rel target = $region3
    $region8: #{tpu_custom_call.1} parent=1 // loop_exit
      _
    %472 = vsyncpa [#allocation4], 1
    %s473 = scalar_lea.sflag [#allocation4], 1
    %474 = vsyncpa %s473, 1
    %475 = vsyncpa [#allocation7], 1
    %s476 = scalar_lea.sflag [#allocation7], 1
    %477 = vsyncpa %s476, 1
    %478 = vsyncpa [#allocation5], 1
    %s479 = scalar_lea.sflag [#allocation5], 1
    %480 = vsyncpa %s479, 1

</llo_original>
